<compile_context>
chip_gen: v5e
topology: v5e:2x2
jax: 0.10.0
libtpu: 0.0.40
codegen_flags: <defaults>
</compile_context>

<pallas_src>
import functools

import jax
import jax.numpy as jnp
from jax.experimental import pallas as pl
from jax.experimental.pallas import tpu as pltpu


def _round_up(n, m):
    return ((n + m - 1) // m) * m


def _logreg_kernel(x_ref, w_ref, b_ref, o_ref):
    # x_ref: (TB, In)  w_ref: (In, OutP)  b_ref: (1, OutP)  o_ref: (TB, OutP)
    z = jnp.dot(x_ref[...], w_ref[...], preferred_element_type=jnp.float32)
    z = z + b_ref[...]                       # bias broadcast over batch rows
    e = jnp.exp(-z)                          # EUP transcendental
    # sigmoid = 1 / (1 + e): approx reciprocal also goes to the (otherwise idle) EUP slot
    o_ref[...] = pl.reciprocal(1.0 + e, approx=True).astype(o_ref.dtype)


def prepare_params(weight, bias, lane=128):
    """One-time parameter prep: PyTorch (Out, In) -> transposed, lane-padded (In, OutP).

    Done once at init time (NOT per forward call), so no per-call transpose copy
    hits HBM, and the kernel's output block is lane-dense.
    """
    out_features, in_features = weight.shape
    out_p = _round_up(out_features, lane)
    w_t = jnp.zeros((in_features, out_p), dtype=jnp.float32)
    w_t = w_t.at[:, :out_features].set(weight.T.astype(jnp.float32))
    b2d = jnp.zeros((1, out_p), dtype=jnp.float32)
    b2d = b2d.at[:, :out_features].set(bias.astype(jnp.float32))
    return w_t, b2d, int(out_features)


def _pick_batch_tile(batch, in_features, out_p,
                     vmem_budget_bytes=24 * 1024 * 1024):
    """Largest batch tile keeping double-buffered x/out + resident W in budget."""
    w_bytes = in_features * out_p * 4            # weight block, resident
    per_row = 2 * (in_features + out_p) * 4      # x + out, double-buffered
    avail = max(vmem_budget_bytes - w_bytes, per_row * 8)
    tb = (avail // per_row // 8) * 8
    tb = max(8, min(1024, int(tb), _round_up(batch, 8)))
    return tb


@functools.partial(jax.jit, static_argnames=("out_features", "block_batch"))
def logistic_regression(x, w_t, b2d, out_features, block_batch=None):
    """sigmoid(x @ W^T + b) with W pre-transposed+padded by prepare_params()."""
    batch, in_features = x.shape
    in_w, out_p = w_t.shape
    assert in_w == in_features

    if block_batch is not None:
        tb = int(block_batch)
        assert tb % 8 == 0
    else:
        tb = _pick_batch_tile(batch, in_features, out_p)

    batch_p = _round_up(batch, tb)
    if batch_p != batch:
        x = jnp.pad(x, ((0, batch_p - batch), (0, 0)))

    grid = (batch_p // tb,)
    out = pl.pallas_call(
        _logreg_kernel,
        out_shape=jax.ShapeDtypeStruct((batch_p, out_p), jnp.float32),
        grid_spec=pltpu.PrefetchScalarGridSpec(
            num_scalar_prefetch=0,
            grid=grid,
            in_specs=[
                pl.BlockSpec((tb, in_features), lambda i: (i, 0)),      # x tile (pipelined)
                pl.BlockSpec((in_features, out_p), lambda i: (0, 0)),   # W resident
                pl.BlockSpec((1, out_p), lambda i: (0, 0)),             # bias resident
            ],
            out_specs=pl.BlockSpec((tb, out_p), lambda i: (i, 0)),
        ),
        compiler_params=pltpu.CompilerParams(
            dimension_semantics=("parallel",),          # megacore-shardable on v7x
            vmem_limit_bytes=32 * 1024 * 1024,          # safe on v5e/v6e/v7x
        ),
        cost_estimate=pl.CostEstimate(
            flops=2 * batch_p * in_features * out_p,
            transcendentals=batch_p * out_p,
            bytes_accessed=4 * (batch_p * in_features
                                + in_features * out_p
                                + batch_p * out_p),
        ),
    )(x, w_t, b2d)
    return out[:batch, :out_features]


if __name__ == "__main__":
    key = jax.random.PRNGKey(0)

    # ---- case 1: shapes matching the original module's toy config ----
    input_size, out_features, batch = 32, 16, 8
    kx, kw, kb, key = jax.random.split(key, 4)
    bound = 1.0 / (input_size ** 0.5)
    weight = jax.random.uniform(kw, (out_features, input_size),
                                minval=-bound, maxval=bound, dtype=jnp.float32)
    bias = jax.random.uniform(kb, (out_features,),
                              minval=-bound, maxval=bound, dtype=jnp.float32)
    x = jax.random.normal(kx, (batch, input_size), dtype=jnp.float32)

    w_t, b2d, out_f = prepare_params(weight, bias)   # one-time prep
    out = jax.block_until_ready(logistic_regression(x, w_t, b2d, out_f))
    ref = jax.nn.sigmoid(x @ weight.T + bias)
    assert out.shape == (batch, out_features)
    assert jnp.allclose(out, ref, atol=2e-3, rtol=2e-3), \
        float(jnp.max(jnp.abs(out - ref)))

    # ---- case 2: exercise multi-tile grid, batch padding and Out padding ----
    input_size2, out_features2, batch2 = 128, 72, 520
    kx2, kw2, kb2, key = jax.random.split(key, 4)
    bound2 = 1.0 / (input_size2 ** 0.5)
    weight2 = jax.random.uniform(kw2, (out_features2, input_size2),
                                 minval=-bound2, maxval=bound2, dtype=jnp.float32)
    bias2 = jax.random.uniform(kb2, (out_features2,),
                               minval=-bound2, maxval=bound2, dtype=jnp.float32)
    x2 = jax.random.normal(kx2, (batch2, input_size2), dtype=jnp.float32)

    w_t2, b2d2, out_f2 = prepare_params(weight2, bias2)
    out2 = jax.block_until_ready(
        logistic_regression(x2, w_t2, b2d2, out_f2, block_batch=128))
    ref2 = jax.nn.sigmoid(x2 @ weight2.T + bias2)
    assert out2.shape == (batch2, out_features2)
    assert jnp.allclose(out2, ref2, atol=2e-3, rtol=2e-3), \
        float(jnp.max(jnp.abs(out2 - ref2)))

    print("KERNEL_OK")
</pallas_src>

<mosaic_0001>
module attributes {stable_mosaic.version = 11 : i64} {
  func.func @_logreg_kernel(%arg0: i32, %arg1: memref<8x32xf32, #tpu.memory_space<vmem>>, %arg2: memref<32x128xf32, #tpu.memory_space<vmem>>, %arg3: memref<1x128xf32, #tpu.memory_space<vmem>>, %arg4: memref<8x128xf32, #tpu.memory_space<vmem>>) attributes {dimension_semantics = [#tpu.dimension_semantics<parallel>], iteration_bounds = array<i64: 1>, scalar_prefetch = 0 : i64, scratch_operands = 0 : i64, tpu.core_type = #tpu.core_type<tc>, window_params = [{transform_indices = @transform_0, window_bounds = array<i64: 8, 32>}, {pipeline_mode = #tpu.pipeline_mode<synchronous>, transform_indices = @transform_1, window_bounds = array<i64: 32, 128>}, {pipeline_mode = #tpu.pipeline_mode<synchronous>, transform_indices = @transform_2, window_bounds = array<i64: 1, 128>}, {transform_indices = @transform_3, window_bounds = array<i64: 8, 128>}]} {
    %c0 = arith.constant 0 : index
    %c0_0 = arith.constant 0 : index
    %0 = vector.load %arg1[%c0, %c0_0] : memref<8x32xf32, #tpu.memory_space<vmem>>, vector<8x32xf32>
    %c0_1 = arith.constant 0 : index
    %c0_2 = arith.constant 0 : index
    %1 = vector.load %arg2[%c0_1, %c0_2] : memref<32x128xf32, #tpu.memory_space<vmem>>, vector<32x128xf32>
    %cst = arith.constant dense<0.000000e+00> : vector<8x128xf32>
    %2 = tpu.matmul %0, %1, %cst {dimension_numbers = #tpu.dot_dimension_numbers<[1], [0], [0], [1], [0, 0, 1, 1], [], []>} : vector<8x32xf32>, vector<32x128xf32>, vector<8x128xf32> -> vector<8x128xf32>
    %c0_3 = arith.constant 0 : index
    %c0_4 = arith.constant 0 : index
    %3 = vector.load %arg3[%c0_3, %c0_4] : memref<1x128xf32, #tpu.memory_space<vmem>>, vector<1x128xf32>
    %4 = vector.broadcast %3 : vector<1x128xf32> to vector<8x128xf32>
    %5 = arith.addf %2, %4 : vector<8x128xf32>
    %cst_5 = arith.constant 0.000000e+00 : f32
    %6 = vector.broadcast %cst_5 : f32 to vector<8x128xf32>
    %7 = arith.subf %6, %5 : vector<8x128xf32>
    %8 = math.exp %7 : vector<8x128xf32>
    %cst_6 = arith.constant 1.000000e+00 : f32
    %9 = vector.broadcast %cst_6 : f32 to vector<8x128xf32>
    %10 = arith.addf %9, %8 : vector<8x128xf32>
    %11 = tpu.reciprocal %10 {approx = true} : vector<8x128xf32> -> vector<8x128xf32>
    %c0_7 = arith.constant 0 : index
    %c0_8 = arith.constant 0 : index
    %12 = vector.load %arg4[%c0_7, %c0_8] : memref<8x128xf32, #tpu.memory_space<vmem>>, vector<8x128xf32>
    tpu.vector_store %arg4[%c0_7, %c0_8], %11 {strides = array<i32>} : memref<8x128xf32, #tpu.memory_space<vmem>>, vector<8x128xf32>,
    return
  }
  func.func @transform_0(%arg0: i32) -> (i32, i32) {
    %c0_i32 = arith.constant 0 : i32
    %c0_i32_0 = arith.constant 0 : i32
    return %arg0, %c0_i32 : i32, i32
  }
  func.func @transform_1(%arg0: i32) -> (i32, i32) {
    %c0_i32 = arith.constant 0 : i32
    %c0_i32_0 = arith.constant 0 : i32
    %c0_i32_1 = arith.constant 0 : i32
    return %c0_i32, %c0_i32_0 : i32, i32
  }
  func.func @transform_2(%arg0: i32) -> (i32, i32) {
    %c0_i32 = arith.constant 0 : i32
    %c0_i32_0 = arith.constant 0 : i32
    %c0_i32_1 = arith.constant 0 : i32
    return %c0_i32, %c0_i32_0 : i32, i32
  }
  func.func @transform_3(%arg0: i32) -> (i32, i32) {
    %c0_i32 = arith.constant 0 : i32
    %c0_i32_0 = arith.constant 0 : i32
    return %arg0, %c0_i32 : i32, i32
  }
}

</mosaic_0001>

<llo_original>
// kernel: logistic_regression.1
$region0: #{logistic_regression.1}
  #allocation0 [shape = 'u32[]', space=smem, size = 0x4, offset = 0x4, fixed_abs, tag = 'smem constant byte address 0x4 - core index']
  #allocation1 [shape = 'u32[72,128]{1,0:T(1,128)}', space=vmem, size = 0x9000, scoped, tag = 'internal scratch']
  %s0 = inlined_call_operand.hbm [shape: f32[8,32], index: 0, kind: input, shape index: {}]
  %s1 = inlined_call_operand.hbm [shape: f32[32,128], index: 1, kind: input, shape index: {}]
  %s2 = inlined_call_operand.vmem [shape: f32[1,128], index: 2, kind: input, shape index: {}]
  %s3 = inlined_call_operand.hbm [shape: f32[8,128], index: 3, kind: output, shape index: {}]
  %s4 = sld [smem:[#allocation0]]
  $region30: #{logistic_regression.1} parent=0
    _
  %s6 = ssub.s32 1, %s4
  %s7 = scalar_select 0, %s6, %s4
  $region1: #{logistic_regression.1} parent=0
    #allocation2 [shape = 'u8[4096]{0}', space=vmem, size = 0x1000, scoped, tag = 'input window, operand 0, single buffered']
    #allocation3 [shape = 's32[1]{0}', space=sflag, size = 0x4, scoped, tag = 'scoped memory for logistic_regression.1']
    #allocation4 [shape = 's32[1]{0}', space=sflag, size = 0x4, scoped, tag = 'scoped memory for logistic_regression.1']
    #allocation5 [shape = 'u8[16384]{0}', space=vmem, size = 0x4000, scoped, tag = 'input window, operand 1, single buffered']
    #allocation6 [shape = 's32[1]{0}', space=sflag, size = 0x4, scoped, tag = 'scoped memory for logistic_regression.1']
    #allocation7 [shape = 'u8[4096]{0}', space=vmem, size = 0x1000, scoped, tag = 'output window, operand 0, single buffered']
    %8 = vsyncpa [#allocation3], 0
    %9 = vsyncpa [#allocation6], 0
    %10 = vsyncpa [#allocation4], 0
    // Predicated region
    $region2: #{logistic_regression.1} parent=1 // pred_check
      _
    $region3: #{logistic_regression.1} parent=1 // pred_check_branch
      %12 = sbr.rel (0) target = $region5
    $region4: #{logistic_regression.1} parent=1 // pred_region
      %14 = vsyncadd [#allocation3], 0
      %s16 = sshll.u32 %s0, 4
      %s17 = int_to_ptr.hbm [resolvable:$true] %s16
      %s18 = sshll.u32 [#allocation2], 4
      %s19 = int_to_ptr.vmem [resolvable:$true] %s18
      %21 = dma.hbm_to_vmem [thread:$0]  %s17, 128, %s19, [#allocation3]
    $region5: #{logistic_regression.1} parent=1 // pred_fallthru
      _
    // Predicated region
    $region6: #{logistic_regression.1} parent=1 // pred_check
      _
    $region7: #{logistic_regression.1} parent=1 // pred_check_branch
      %23 = sbr.rel (0) target = $region9
    $region8: #{logistic_regression.1} parent=1 // pred_region
      %25 = vsyncadd [#allocation6], 0
      %s26 = sshll.u32 %s1, 4
      %s27 = int_to_ptr.hbm [resolvable:$true] %s26
      %s28 = sshll.u32 [#allocation5], 4
      %s29 = int_to_ptr.vmem [resolvable:$true] %s28
      %34 = dma.hbm_to_vmem [thread:$0]  %s27, 512, %s29, [#allocation6], 128, 128, 8
    $region9: #{logistic_regression.1} parent=1 // pred_fallthru
      _
    // Predicated region
    $region10: #{logistic_regression.1} parent=1 // pred_check
      _
    $region11: #{logistic_regression.1} parent=1 // pred_check_branch
      %36 = sbr.rel (0) target = $region13
    $region12: #{logistic_regression.1} parent=1 // pred_region
      _
    $region13: #{logistic_regression.1} parent=1 // pred_fallthru
      _
    // Predicated region
    $region14: #{logistic_regression.1} parent=1 // pred_check
      _
    $region15: #{logistic_regression.1} parent=1 // pred_check_branch
      %38 = sbr.rel (0) target = $region17
    $region16: #{logistic_regression.1} parent=1 // pred_region
      %40 = dma.done [#allocation3], 128
    $region17: #{logistic_regression.1} parent=1 // pred_fallthru
      _
    // Predicated region
    $region18: #{logistic_regression.1} parent=1 // pred_check
      _
    $region19: #{logistic_regression.1} parent=1 // pred_check_branch
      %42 = sbr.rel (0) target = $region21
    $region20: #{logistic_regression.1} parent=1 // pred_region
      %44 = dma.done [#allocation6], 512
    $region21: #{logistic_regression.1} parent=1 // pred_fallthru
      _
    %v45 = vld [vmem:[#allocation2] sm:$0xff]
    %v46 = vld [vmem:[#allocation5] sm:$0xff]
    %v47 = vld [vmem:[#allocation5 + $0x8] sm:$0xff]
    %v48 = vld [vmem:[#allocation5 + $0x10] sm:$0xff]
    %v49 = vld [vmem:[#allocation5 + $0x18] sm:$0xff]
    %v50 = vld [vmem:[%s2] sm:$0x1]
    %v52 = vperm.slane %v50, 0
    %vm54 = vcmask 261120
    %v56 = vsel %vm54, %v45, 0
    %58 = vmatpush.msra.mxu0 0.0
    %59 = vmatpush.msra.mxu0 0.0
    %60 = vmatpush.msra.mxu0 0.0
    %61 = vmatpush.msra.mxu0 0.0
    %62 = vmatpush.msra.mxu0 0.0
    %63 = vmatpush.msra.mxu0 0.0
    %64 = vmatpush.msra.mxu0 0.0
    %65 = vmatpush.msra.mxu0 0.0
    %66 = vmatpush.msra.mxu0 0.0
    %67 = vmatpush.msra.mxu0 0.0
    %68 = vmatpush.msra.mxu0 0.0
    %69 = vmatpush.msra.mxu0 0.0
    %70 = vmatpush.msra.mxu0 %v49
    %71 = vmatpush.msra.mxu0 %v48
    %72 = vmatpush.msra.mxu0 %v47
    %73 = vmatpush.msra.mxu0 %v46
    %74 = vmatmul.f32.gmra.mxu0 %v56
    %v75 = vpop.f32.mrf.mxu0
    %v76 = vadd.f32 %v52, %v75
    %77 = vdwg.mxu0
    %v78 = vsub.f32 0.0, %v76
    %v79 = vmul.f32 %v78, 1.442695
    %v80 = vpow.pop %v79
    %v81 = vadd.f32 %v80, 1.0
    %v82 = vrcp.pop %v81
    %83 = vst [vmem:[#allocation7] sm:$0xff] %v82
    // Predicated region
    $region22: #{logistic_regression.1} parent=1 // pred_check
      _
    $region23: #{logistic_regression.1} parent=1 // pred_check_branch
      %85 = sbr.rel (0) target = $region25
    $region24: #{logistic_regression.1} parent=1 // pred_region
      %87 = vsyncadd [#allocation4], 0
      %s89 = sshll.u32 [#allocation7], 4
      %s90 = int_to_ptr.vmem [resolvable:$true] %s89
      %s91 = sshll.u32 %s3, 4
      %s92 = int_to_ptr.hbm [resolvable:$true] %s91
      %94 = dma.vmem_to_hbm [thread:$0]  %s90, 128, %s92, [#allocation4]
    $region25: #{logistic_regression.1} parent=1 // pred_fallthru
      _
    // Predicated region
    $region26: #{logistic_regression.1} parent=1 // pred_check
      _
    $region27: #{logistic_regression.1} parent=1 // pred_check_branch
      %96 = sbr.rel (0) target = $region29
    $region28: #{logistic_regression.1} parent=1 // pred_region
      %98 = dma.done [#allocation4], 128
    $region29: #{logistic_regression.1} parent=1 // pred_fallthru
      _
    %99 = vsyncpa [#allocation3], 1
    %100 = vsyncpa [#allocation6], 1
    %101 = vsyncpa [#allocation4], 1

</llo_original>
